<compile_context>
chip_gen: v7x
topology: tpu7x:2x2x1
jax: 0.10.0
libtpu: 0.0.40
codegen_flags: <defaults>
</compile_context>

<pallas_src>
import jax
import jax.numpy as jnp
from jax.experimental import pallas as pl
from jax.experimental.pallas import tpu as pltpu


def _round_up(x: int, m: int) -> int:
    return ((x + m - 1) // m) * m


def _decompress_kernel(x_ref, w_ref, p_ref, o_ref):
    # x_ref: (tm, K)  w_ref: (K, D)  p_ref: (3, D) = [bias; gamma; beta]
    # o_ref: (tm, D)
    p = p_ref[...]                      # single resident load of the constants
    bias = p[0:1, :]
    gamma = p[1:2, :]
    beta = p[2:3, :]

    # Linear (MXU, f32 accumulation) + bias
    y = jnp.dot(x_ref[...], w_ref[...], preferred_element_type=jnp.float32)
    y = y + bias

    # ReLU
    y = jnp.maximum(y, 0.0)

    # LayerNorm over the feature axis (eps = 1e-5, affine), all in f32.
    # Two-pass centered variance for numerical stability.
    mean = jnp.mean(y, axis=-1, keepdims=True)
    centered = y - mean
    var = jnp.mean(centered * centered, axis=-1, keepdims=True)
    out = centered * jax.lax.rsqrt(var + 1e-5) * gamma + beta

    o_ref[...] = out.astype(o_ref.dtype)


def feature_decompressor(x, w, b, gamma, beta, *, tm=4096):
    """x: (N, K), w: (K, D), b/gamma/beta: (D,). Returns (N, D) in x.dtype.

    Works for any N (partial last tile handled by Pallas' out-of-bounds
    masking, rows are independent), any x/w dtype supported by the MXU
    (f32 or bf16); LayerNorm statistics are computed in f32.
    """
    N, K = x.shape
    D = w.shape[1]
    assert D % 128 == 0, "output_dim must be a multiple of 128 (lane-dense output)"

    # Effective row tile: as large as requested, capped at the (8-aligned)
    # number of rows, and always a multiple of 8 (sublane alignment).
    tm_eff = min(tm, _round_up(N, 8))
    tm_eff = max(8, _round_up(tm_eff, 8))
    grid = pl.cdiv(N, tm_eff)

    # Pack the three (D,) constants into one resident (3, D) block.
    params = jnp.stack(
        [b.astype(jnp.float32), gamma.astype(jnp.float32), beta.astype(jnp.float32)],
        axis=0,
    )

    itemsize = jnp.dtype(x.dtype).itemsize
    cost = pl.CostEstimate(
        flops=2 * N * K * D,
        transcendentals=0,
        bytes_accessed=itemsize * (N * K + N * D) + 4 * (K * D + 3 * D),
    )

    return pl.pallas_call(
        _decompress_kernel,
        out_shape=jax.ShapeDtypeStruct((N, D), x.dtype),
        grid_spec=pltpu.PrefetchScalarGridSpec(
            num_scalar_prefetch=0,
            grid=(grid,),
            in_specs=[
                pl.BlockSpec((tm_eff, K), lambda i: (i, 0)),  # x row tile
                pl.BlockSpec((K, D), lambda i: (0, 0)),       # full weight (resident)
                pl.BlockSpec((3, D), lambda i: (0, 0)),       # [b; gamma; beta]
            ],
            out_specs=pl.BlockSpec((tm_eff, D), lambda i: (i, 0)),
        ),
        compiler_params=pltpu.CompilerParams(
            dimension_semantics=("parallel",),
        ),
        cost_estimate=cost,
    )(x, w, params)


def _reference(x, w, b, gamma, beta):
    y = jnp.maximum(x @ w + b, 0.0)
    mu = y.mean(axis=-1, keepdims=True)
    var = ((y - mu) ** 2).mean(axis=-1, keepdims=True)
    return (y - mu) * jax.lax.rsqrt(var + 1e-5) * gamma + beta


if __name__ == "__main__":
    # Small shapes consistent with the module: tokens = batch*seq = 2*8 = 16,
    # compressed_dim = 32, output_dim = 128.
    batch, seq = 2, 8
    compressed_dim, output_dim = 32, 128
    N = batch * seq

    key = jax.random.PRNGKey(0)
    kx, kw, kb, kx2 = jax.random.split(key, 4)

    x = jax.random.normal(kx, (N, compressed_dim), dtype=jnp.float32)

    # Deterministic parameter init (PyTorch-style uniform for Linear,
    # ones/zeros for LayerNorm affine).
    bound = 1.0 / (compressed_dim ** 0.5)
    w = jax.random.uniform(kw, (compressed_dim, output_dim),
                           minval=-bound, maxval=bound, dtype=jnp.float32)
    b = jax.random.uniform(kb, (output_dim,),
                           minval=-bound, maxval=bound, dtype=jnp.float32)
    gamma = jnp.ones((output_dim,), dtype=jnp.float32)
    beta = jnp.zeros((output_dim,), dtype=jnp.float32)

    out = feature_decompressor(x, w, b, gamma, beta)
    out = jax.block_until_ready(out)
    ref = _reference(x, w, b, gamma, beta)
    assert out.shape == (N, output_dim)
    assert jnp.allclose(out, ref, atol=1e-5, rtol=1e-5)

    # Boundary-tile check: N not divisible by the row tile (partial last
    # block with out-of-bounds reads masked on writeback).
    N2 = 300
    x2 = jax.random.normal(kx2, (N2, compressed_dim), dtype=jnp.float32)
    out2 = feature_decompressor(x2, w, b, gamma, beta, tm=128)
    out2 = jax.block_until_ready(out2)
    ref2 = _reference(x2, w, b, gamma, beta)
    assert out2.shape == (N2, output_dim)
    assert jnp.allclose(out2, ref2, atol=1e-5, rtol=1e-5)

    print("KERNEL_OK")
</pallas_src>

<mosaic_0001>
module attributes {stable_mosaic.version = 11 : i64} {
  func.func @_decompress_kernel(%arg0: i32, %arg1: memref<16x32xf32, #tpu.memory_space<vmem>>, %arg2: memref<32x128xf32, #tpu.memory_space<vmem>>, %arg3: memref<3x128xf32, #tpu.memory_space<vmem>>, %arg4: memref<16x128xf32, #tpu.memory_space<vmem>>) attributes {dimension_semantics = [#tpu.dimension_semantics<parallel>], iteration_bounds = array<i64: 1>, scalar_prefetch = 0 : i64, scratch_operands = 0 : i64, tpu.core_type = #tpu.core_type<tc>, window_params = [{transform_indices = @transform_0, window_bounds = array<i64: 16, 32>}, {pipeline_mode = #tpu.pipeline_mode<synchronous>, transform_indices = @transform_1, window_bounds = array<i64: 32, 128>}, {pipeline_mode = #tpu.pipeline_mode<synchronous>, transform_indices = @transform_2, window_bounds = array<i64: 3, 128>}, {transform_indices = @transform_3, window_bounds = array<i64: 16, 128>}]} {
    %c0 = arith.constant 0 : index
    %c0_0 = arith.constant 0 : index
    %0 = vector.load %arg3[%c0, %c0_0] : memref<3x128xf32, #tpu.memory_space<vmem>>, vector<3x128xf32>
    %1 = vector.extract_strided_slice %0 {offsets = [0, 0], sizes = [1, 128], strides = [1, 1]} : vector<3x128xf32> to vector<1x128xf32>
    %2 = vector.extract_strided_slice %0 {offsets = [1, 0], sizes = [1, 128], strides = [1, 1]} : vector<3x128xf32> to vector<1x128xf32>
    %3 = vector.extract_strided_slice %0 {offsets = [2, 0], sizes = [1, 128], strides = [1, 1]} : vector<3x128xf32> to vector<1x128xf32>
    %c0_1 = arith.constant 0 : index
    %c0_2 = arith.constant 0 : index
    %4 = vector.load %arg1[%c0_1, %c0_2] : memref<16x32xf32, #tpu.memory_space<vmem>>, vector<16x32xf32>
    %c0_3 = arith.constant 0 : index
    %c0_4 = arith.constant 0 : index
    %5 = vector.load %arg2[%c0_3, %c0_4] : memref<32x128xf32, #tpu.memory_space<vmem>>, vector<32x128xf32>
    %cst = arith.constant dense<0.000000e+00> : vector<16x128xf32>
    %6 = tpu.matmul %4, %5, %cst {dimension_numbers = #tpu.dot_dimension_numbers<[1], [0], [0], [1], [0, 0, 1, 1], [], []>} : vector<16x32xf32>, vector<32x128xf32>, vector<16x128xf32> -> vector<16x128xf32>
    %7 = vector.broadcast %1 : vector<1x128xf32> to vector<16x128xf32>
    %8 = arith.addf %6, %7 : vector<16x128xf32>
    %cst_5 = arith.constant 0.000000e+00 : f32
    %9 = vector.broadcast %cst_5 : f32 to vector<16x128xf32>
    %10 = arith.maximumf %8, %9 : vector<16x128xf32>
    %cst_6 = arith.constant dense<0.000000e+00> : vector<16xf32>
    %11 = vector.multi_reduction <add>, %10, %cst_6 [1] : vector<16x128xf32> to vector<16xf32>
    %12 = vector.shape_cast %11 : vector<16xf32> to vector<16x1xf32>
    %cst_7 = arith.constant 1.280000e+02 : f32
    %13 = vector.broadcast %cst_7 : f32 to vector<16x1xf32>
    %14 = arith.divf %12, %13 : vector<16x1xf32>
    %15 = vector.broadcast %14 : vector<16x1xf32> to vector<16x128xf32>
    %16 = arith.subf %10, %15 : vector<16x128xf32>
    %17 = arith.mulf %16, %16 : vector<16x128xf32>
    %cst_8 = arith.constant dense<0.000000e+00> : vector<16xf32>
    %18 = vector.multi_reduction <add>, %17, %cst_8 [1] : vector<16x128xf32> to vector<16xf32>
    %19 = vector.shape_cast %18 : vector<16xf32> to vector<16x1xf32>
    %cst_9 = arith.constant 1.280000e+02 : f32
    %20 = vector.broadcast %cst_9 : f32 to vector<16x1xf32>
    %21 = arith.divf %19, %20 : vector<16x1xf32>
    %cst_10 = arith.constant 9.99999974E-6 : f32
    %22 = vector.broadcast %cst_10 : f32 to vector<16x1xf32>
    %23 = arith.addf %21, %22 : vector<16x1xf32>
    %24 = math.rsqrt %23 : vector<16x1xf32>
    %25 = vector.broadcast %24 : vector<16x1xf32> to vector<16x128xf32>
    %26 = arith.mulf %16, %25 : vector<16x128xf32>
    %27 = vector.broadcast %2 : vector<1x128xf32> to vector<16x128xf32>
    %28 = arith.mulf %26, %27 : vector<16x128xf32>
    %29 = vector.broadcast %3 : vector<1x128xf32> to vector<16x128xf32>
    %30 = arith.addf %28, %29 : vector<16x128xf32>
    %c0_11 = arith.constant 0 : index
    %c0_12 = arith.constant 0 : index
    %31 = vector.load %arg4[%c0_11, %c0_12] : memref<16x128xf32, #tpu.memory_space<vmem>>, vector<16x128xf32>
    tpu.vector_store %arg4[%c0_11, %c0_12], %30 {strides = array<i32>} : memref<16x128xf32, #tpu.memory_space<vmem>>, vector<16x128xf32>,
    return
  }
  func.func @transform_0(%arg0: i32) -> (i32, i32) {
    %c0_i32 = arith.constant 0 : i32
    %c0_i32_0 = arith.constant 0 : i32
    return %arg0, %c0_i32 : i32, i32
  }
  func.func @transform_1(%arg0: i32) -> (i32, i32) {
    %c0_i32 = arith.constant 0 : i32
    %c0_i32_0 = arith.constant 0 : i32
    %c0_i32_1 = arith.constant 0 : i32
    return %c0_i32, %c0_i32_0 : i32, i32
  }
  func.func @transform_2(%arg0: i32) -> (i32, i32) {
    %c0_i32 = arith.constant 0 : i32
    %c0_i32_0 = arith.constant 0 : i32
    %c0_i32_1 = arith.constant 0 : i32
    return %c0_i32, %c0_i32_0 : i32, i32
  }
  func.func @transform_3(%arg0: i32) -> (i32, i32) {
    %c0_i32 = arith.constant 0 : i32
    %c0_i32_0 = arith.constant 0 : i32
    return %arg0, %c0_i32 : i32, i32
  }
}

</mosaic_0001>

<llo_original>
// kernel: tpu_custom_call.1
$region0: #{tpu_custom_call.1}
  #allocation0 [shape = 'u32[]', space=smem, size = 0x4, offset = 0x4, fixed_abs, tag = 'smem constant byte address 0x4 - core index']
  #allocation1 [shape = 'u32[144,128]{1,0:T(1,128)}', space=vmem, size = 0x12000, scoped, tag = 'internal scratch']
  %s0 = inlined_call_operand.hbm [shape: f32[16,32], index: 0, kind: input, shape index: {}]
  %s1 = inlined_call_operand.hbm [shape: f32[32,128], index: 1, kind: input, shape index: {}]
  %s2 = inlined_call_operand.vmem [shape: f32[3,128], index: 2, kind: input, shape index: {}]
  %s3 = inlined_call_operand.hbm [shape: f32[16,128], index: 3, kind: output, shape index: {}]
  %s4 = sld [smem:[#allocation0]]
  $region30: #{tpu_custom_call.1} parent=0
    _
  %s6 = ssub.s32 1, %s4
  %s7 = scalar_select 0, %s6, %s4
  $region1: #{tpu_custom_call.1} parent=0
    #allocation2 [shape = 'u8[8192]{0}', space=vmem, size = 0x2000, scoped, tag = 'input window, operand 0, single buffered']
    #allocation3 [shape = 's32[1]{0}', space=sflag, size = 0x4, scoped, tag = 'scoped memory for tpu_custom_call.1']
    #allocation4 [shape = 's32[1]{0}', space=sflag, size = 0x4, scoped, tag = 'scoped memory for tpu_custom_call.1']
    #allocation5 [shape = 'u8[16384]{0}', space=vmem, size = 0x4000, scoped, tag = 'input window, operand 1, single buffered']
    #allocation6 [shape = 's32[1]{0}', space=sflag, size = 0x4, scoped, tag = 'scoped memory for tpu_custom_call.1']
    #allocation7 [shape = 'u8[8192]{0}', space=vmem, size = 0x2000, scoped, tag = 'output window, operand 0, single buffered']
    %8 = vsyncpa [#allocation3], 0
    %9 = vsyncpa [#allocation6], 0
    %10 = vsyncpa [#allocation4], 0
    // Predicated region
    $region2: #{tpu_custom_call.1} parent=1 // pred_check
      _
    $region3: #{tpu_custom_call.1} parent=1 // pred_check_branch
      %12 = sbr.rel (0) target = $region5
    $region4: #{tpu_custom_call.1} parent=1 // pred_region
      %s14 = ssub.s32 256, 256
      %15 = vsyncadd [#allocation3], %s14
      %s16 = sshll.u32 [#allocation2], 4
      %s17 = int_to_ptr.vmem [resolvable:$true] %s16
      %22 = dma.hbm_to_vmem [thread:$0]  %s0, 256, %s17, [#allocation3], 128, 128, 8
    $region5: #{tpu_custom_call.1} parent=1 // pred_fallthru
      _
    // Predicated region
    $region6: #{tpu_custom_call.1} parent=1 // pred_check
      _
    $region7: #{tpu_custom_call.1} parent=1 // pred_check_branch
      %24 = sbr.rel (0) target = $region9
    $region8: #{tpu_custom_call.1} parent=1 // pred_region
      %s26 = ssub.s32 512, 512
      %27 = vsyncadd [#allocation6], %s26
      %s28 = sshll.u32 [#allocation5], 4
      %s29 = int_to_ptr.vmem [resolvable:$true] %s28
      %34 = dma.hbm_to_vmem [thread:$0]  %s1, 512, %s29, [#allocation6], 128, 128, 8
    $region9: #{tpu_custom_call.1} parent=1 // pred_fallthru
      _
    // Predicated region
    $region10: #{tpu_custom_call.1} parent=1 // pred_check
      _
    $region11: #{tpu_custom_call.1} parent=1 // pred_check_branch
      %36 = sbr.rel (0) target = $region13
    $region12: #{tpu_custom_call.1} parent=1 // pred_region
      _
    $region13: #{tpu_custom_call.1} parent=1 // pred_fallthru
      _
    // Predicated region
    $region14: #{tpu_custom_call.1} parent=1 // pred_check
      _
    $region15: #{tpu_custom_call.1} parent=1 // pred_check_branch
      %38 = sbr.rel (0) target = $region17
    $region16: #{tpu_custom_call.1} parent=1 // pred_region
      %39 = dma.done [#allocation3], 256
    $region17: #{tpu_custom_call.1} parent=1 // pred_fallthru
      _
    // Predicated region
    $region18: #{tpu_custom_call.1} parent=1 // pred_check
      _
    $region19: #{tpu_custom_call.1} parent=1 // pred_check_branch
      %41 = sbr.rel (0) target = $region21
    $region20: #{tpu_custom_call.1} parent=1 // pred_region
      %42 = dma.done [#allocation6], 512
    $region21: #{tpu_custom_call.1} parent=1 // pred_fallthru
      _
    %v43 = vld [vmem:[%s2] sm:$0x7]
    %v44 = vld [vmem:[#allocation2] sm:$0xff]
    %v45 = vld [vmem:[#allocation2 + $0x8] sm:$0xff]
    %v46 = vld [vmem:[#allocation5] sm:$0xff]
    %v47 = vld [vmem:[#allocation5 + $0x8] sm:$0xff]
    %v48 = vld [vmem:[#allocation5 + $0x10] sm:$0xff]
    %v49 = vld [vmem:[#allocation5 + $0x18] sm:$0xff]
    %v50 = vlaneseq
    %v51 = vshrl.u32 %v50, 7
    %v52 = vsub.s32 0, %v51
    %v53 = vrot.slane %v43, %v52
    %vm54 = vcmask 261120
    %v56 = vsel %vm54, %v44, 0
    %v59 = vsel %vm54, %v45, 0
    %61 = vmatprep.subr.mxu0 0.0
    %62 = vmatpush1.msra.mxu0 %v46
    %63 = vmatprep.subr.mxu0 0.0
    %64 = vmatpush1.msra.mxu0 %v47
    %65 = vmatprep.subr.mxu0 0.0
    %66 = vmatpush1.msra.mxu0 %v48
    %67 = vmatprep.subr.mxu0 0.0
    %68 = vmatpush1.msra.mxu0 %v49
    %69 = vmatprep.subr.mxu0 0.0
    %70 = vmatpush1.msra.mxu0 0.0
    %71 = vmatprep.subr.mxu0 0.0
    %72 = vmatpush1.msra.mxu0 0.0
    %73 = vmatprep.subr.mxu0 0.0
    %74 = vmatpush1.msra.mxu0 0.0
    %75 = vmatprep.subr.mxu0 0.0
    %76 = vmatpush1.msra.mxu0 0.0
    %77 = vmatprep.subr.mxu0 0.0
    %78 = vmatpush1.msra.mxu0 0.0
    %79 = vmatprep.subr.mxu0 0.0
    %80 = vmatpush1.msra.mxu0 0.0
    %81 = vmatprep.subr.mxu0 0.0
    %82 = vmatpush1.msra.mxu0 0.0
    %83 = vmatprep.subr.mxu0 0.0
    %84 = vmatpush1.msra.mxu0 0.0
    %85 = vmatprep.subr.mxu0 0.0
    %86 = vmatpush1.msra.mxu0 0.0
    %87 = vmatprep.subr.mxu0 0.0
    %88 = vmatpush1.msra.mxu0 0.0
    %89 = vmatprep.subr.mxu0 0.0
    %90 = vmatpush1.msra.mxu0 0.0
    %91 = vmatprep.subr.mxu0 0.0
    %92 = vmatpush1.msra.mxu0 0.0
    %93 = vmatprep.subr.mxu0 0.0
    %94 = vmatpush1.msra.mxu0 0.0
    %95 = vmatprep.subr.mxu0 0.0
    %96 = vmatpush1.msra.mxu0 0.0
    %97 = vmatprep.subr.mxu0 0.0
    %98 = vmatpush1.msra.mxu0 0.0
    %99 = vmatprep.subr.mxu0 0.0
    %100 = vmatpush1.msra.mxu0 0.0
    %101 = vmatprep.subr.mxu0 0.0
    %102 = vmatpush1.msra.mxu0 0.0
    %103 = vmatprep.subr.mxu0 0.0
    %104 = vmatpush1.msra.mxu0 0.0
    %105 = vmatprep.subr.mxu0 0.0
    %106 = vmatpush1.msra.mxu0 0.0
    %107 = vmatprep.subr.mxu0 0.0
    %108 = vmatpush1.msra.mxu0 0.0
    %109 = vmatprep.subr.mxu0 0.0
    %110 = vmatpush1.msra.mxu0 0.0
    %111 = vmatprep.subr.mxu0 0.0
    %112 = vmatpush1.msra.mxu0 0.0
    %113 = vmatprep.subr.mxu0 0.0
    %114 = vmatpush1.msra.mxu0 0.0
    %115 = vmatprep.subr.mxu0 0.0
    %116 = vmatpush1.msra.mxu0 0.0
    %117 = vmatprep.subr.mxu0 0.0
    %118 = vmatpush1.msra.mxu0 0.0
    %119 = vmatprep.subr.mxu0 0.0
    %120 = vmatpush1.msra.mxu0 0.0
    %121 = vmatprep.subr.mxu0 0.0
    %122 = vmatpush1.msra.mxu0 0.0
    %123 = vmatprep.subr.mxu0 0.0
    %124 = vmatpush1.msra.mxu0 0.0
    %125 = vmatprep.mubr.f32.mxu0 0.0
    %126 = vmatmul.mubr.f32.gmra.mrb[0].mxu0 %v56
    %v127 = vpop.f32.mrb[0].mxu0
    %v128 = vadd.f32 %v53, %v127
    %v129 = vpop.f32.mrb[0].mxu0
    %130 = vmatprep.mubr.f32.mxu0 0.0
    %131 = vmatmul.mubr.f32.gmra.mrb[0].mxu0 %v59
    %v132 = vpop.f32.mrb[0].mxu0
    %v133 = vadd.f32 %v53, %v132
    %v134 = vpop.f32.mrb[0].mxu0
    %135 = vdwg.mxu0
    %v136 = vmax.f32 %v128, 0.0
    %v137 = vmax.f32 %v133, 0.0
    %138 = vadd.xlane.f32.xlu0 %v136
    %v139 = vpop.xlane.xlu0 %138
    %140 = vadd.xlane.f32.xlu0 %v137
    %v141 = vpop.xlane.xlu0 %140
    %v142 = vrcp.pop 128.0
    %v143 = vmul.f32 %v139, %v142
    %v144 = vmul.f32 %v141, %v142
    %v145 = vsub.f32 %v136, %v143
    %v146 = vsub.f32 %v137, %v144
    %v147 = vmul.f32 %v145, %v145
    %v148 = vmul.f32 %v146, %v146
    %149 = vadd.xlane.f32.xlu0 %v147
    %v150 = vpop.xlane.xlu0 %149
    %151 = vadd.xlane.f32.xlu0 %v148
    %v152 = vpop.xlane.xlu0 %151
    %v153 = vmul.f32 %v150, %v142
    %v154 = vmul.f32 %v152, %v142
    %v155 = vadd.f32 %v153, 1e-05
    %v156 = vadd.f32 %v154, 1e-05
    %v157 = vrsqrt.pop %v155
    %v158 = vrsqrt.pop %v156
    %v159 = vmul.f32 %v145, %v157
    %v160 = vmul.f32 %v146, %v158
    %v161 = vlaneseq
    %v162 = vshrl.u32 %v161, 7
    %v163 = vsub.s32 1, %v162
    %v164 = vrot.slane %v43, %v163
    %v165 = vmul.f32 %v159, %v164
    %v166 = vmul.f32 %v160, %v164
    %v167 = vlaneseq
    %v168 = vshrl.u32 %v167, 7
    %v169 = vsub.s32 2, %v168
    %v170 = vrot.slane %v43, %v169
    %v171 = vadd.f32 %v165, %v170
    %v172 = vadd.f32 %v166, %v170
    %173 = vst [vmem:[#allocation7] sm:$0xff] %v171
    %174 = vst [vmem:[#allocation7 + $0x8] sm:$0xff] %v172
    // Predicated region
    $region22: #{tpu_custom_call.1} parent=1 // pred_check
      _
    $region23: #{tpu_custom_call.1} parent=1 // pred_check_branch
      %176 = sbr.rel (0) target = $region25
    $region24: #{tpu_custom_call.1} parent=1 // pred_region
      %s178 = ssub.s32 256, 256
      %179 = vsyncadd [#allocation4], %s178
      %s180 = sshll.u32 [#allocation7], 4
      %s181 = int_to_ptr.vmem [resolvable:$true] %s180
      %186 = dma.vmem_to_hbm [thread:$0]  %s181, 256, %s3, [#allocation4], 128, 128, 8
    $region25: #{tpu_custom_call.1} parent=1 // pred_fallthru
      _
    // Predicated region
    $region26: #{tpu_custom_call.1} parent=1 // pred_check
      _
    $region27: #{tpu_custom_call.1} parent=1 // pred_check_branch
      %188 = sbr.rel (0) target = $region29
    $region28: #{tpu_custom_call.1} parent=1 // pred_region
      %189 = dma.done [#allocation4], 256
    $region29: #{tpu_custom_call.1} parent=1 // pred_fallthru
      _
    %190 = vsyncpa [#allocation3], 1
    %191 = vsyncpa [#allocation6], 1
    %192 = vsyncpa [#allocation4], 1

</llo_original>
